<compile_context>
chip_gen: v5e
topology: v5e:2x2
jax: 0.10.0
libtpu: 0.0.40
codegen_flags: <defaults>
</compile_context>

<pallas_src>
import math
import functools

import jax
import jax.numpy as jnp
from jax import lax
from jax.experimental import pallas as pl
from jax.experimental.pallas import tpu as pltpu


# ----------------------------------------------------------------------------
# helpers
# ----------------------------------------------------------------------------
def _sublane(dtype):
    """Minimum sublane tile for a dtype (8 for 4-byte, 16 for 2-byte, ...)."""
    return {4: 8, 2: 16, 1: 32}.get(jnp.dtype(dtype).itemsize, 8)


def _pick_tile(dim, preferred, align):
    """Largest tile <= preferred that divides dim and respects alignment."""
    if dim <= preferred:
        return dim
    t = (preferred // align) * align
    while t >= align:
        if dim % t == 0:
            return t
        t -= align
    # TODO(synk): fall back to a cdiv grid + masked epilogue instead of a
    # single whole-axis block when no aligned divisor exists.
    return dim


# ----------------------------------------------------------------------------
# Tiled linear:  out = x @ w + b          (x: [M, K], w: [K, N], b: [N])
# ----------------------------------------------------------------------------
def _linear_kernel(x_ref, w_ref, b_ref, o_ref, acc_ref):
    k = pl.program_id(2)

    @pl.when(k == 0)
    def _init():
        acc_ref[...] = jnp.zeros_like(acc_ref)

    acc_ref[...] += jnp.dot(x_ref[...], w_ref[...],
                            preferred_element_type=jnp.float32)

    @pl.when(k == pl.num_programs(2) - 1)
    def _finalize():
        o_ref[...] = (acc_ref[...] + b_ref[...].astype(jnp.float32)
                      ).astype(o_ref.dtype)


def linear(x, w, b, *, tm=256, tn=256, tk=1024):
    M, K = x.shape
    _, N = w.shape
    tm = _pick_tile(M, tm, _sublane(x.dtype))
    tn = _pick_tile(N, tn, 128)
    tk = _pick_tile(K, tk, 128)
    grid = (M // tm, N // tn, K // tk)
    return pl.pallas_call(
        _linear_kernel,
        out_shape=jax.ShapeDtypeStruct((M, N), x.dtype),
        grid_spec=pltpu.PrefetchScalarGridSpec(
            num_scalar_prefetch=0,
            grid=grid,
            in_specs=[
                pl.BlockSpec((tm, tk), lambda i, j, k: (i, k)),
                pl.BlockSpec((tk, tn), lambda i, j, k: (k, j)),
                pl.BlockSpec((1, tn), lambda i, j, k: (0, j)),
            ],
            out_specs=pl.BlockSpec((tm, tn), lambda i, j, k: (i, j)),
            scratch_shapes=[pltpu.VMEM((tm, tn), jnp.float32)],
        ),
        compiler_params=pltpu.CompilerParams(
            dimension_semantics=("parallel", "parallel", "arbitrary")),
    )(x, w, b.reshape(1, N))


# ----------------------------------------------------------------------------
# Tiled linear from a head-major input:
#   out[s, n] = sum_{h, d} x3[h, s, d] * w[h*D + d, n] + b[n]
# Consumes the attention output directly in its [H, S, D] layout, so there is
# no XLA transpose/reshape round-trip between attention and o_proj.
# ----------------------------------------------------------------------------
def _linear_heads_kernel(x_ref, w_ref, b_ref, o_ref, acc_ref):
    k = pl.program_id(2)

    @pl.when(k == 0)
    def _init():
        acc_ref[...] = jnp.zeros_like(acc_ref)

    acc_ref[...] += jnp.dot(x_ref[0], w_ref[...],
                            preferred_element_type=jnp.float32)

    @pl.when(k == pl.num_programs(2) - 1)
    def _finalize():
        o_ref[...] = (acc_ref[...] + b_ref[...].astype(jnp.float32)
                      ).astype(o_ref.dtype)


def linear_from_heads(x3, w, b, *, tm=256, tn=256):
    H, M, D = x3.shape
    K, N = w.shape
    assert K == H * D
    tm = _pick_tile(M, tm, _sublane(x3.dtype))
    tn = _pick_tile(N, tn, 128)
    grid = (M // tm, N // tn, H)
    return pl.pallas_call(
        _linear_heads_kernel,
        out_shape=jax.ShapeDtypeStruct((M, N), x3.dtype),
        grid_spec=pltpu.PrefetchScalarGridSpec(
            num_scalar_prefetch=0,
            grid=grid,
            in_specs=[
                pl.BlockSpec((1, tm, D), lambda i, j, k: (k, i, 0)),
                pl.BlockSpec((D, tn), lambda i, j, k: (k, j)),
                pl.BlockSpec((1, tn), lambda i, j, k: (0, j)),
            ],
            out_specs=pl.BlockSpec((tm, tn), lambda i, j, k: (i, j)),
            scratch_shapes=[pltpu.VMEM((tm, tn), jnp.float32)],
        ),
        compiler_params=pltpu.CompilerParams(
            dimension_semantics=("parallel", "parallel", "arbitrary")),
    )(x3, w, b.reshape(1, N))


# ----------------------------------------------------------------------------
# RoPE pre-pass (neox): reads the q or k column group of the fused qkv tensor
# directly and writes a head-major [H, S, D] rotated tensor.  The rotate-half
# is a (D, D) sign-permutation matmul so no lane roll / slice is needed.
# The softmax scale can be folded into the cos/sin tables by the caller.
# ----------------------------------------------------------------------------
def _rope_kernel(x_ref, rot_ref, cos_ref, sin_ref, o_ref):
    x = x_ref[...].astype(jnp.float32)                       # (t, D)
    # TODO(synk): pltpu.roll(x, D//2, axis=1) (XLU) is the canonical rotate;
    # the permutation matmul is used here for maximum lowering portability in
    # a non-hot, one-shot pre-pass.
    rot = jnp.dot(x, rot_ref[...], preferred_element_type=jnp.float32)
    o_ref[0] = (x * cos_ref[...] + rot * sin_ref[...]).astype(o_ref.dtype)


def rope_rotate_heads(qkv, rot_p, cos, sin, *, col_base_blk, num_heads,
                      head_dim, seq_tile=256):
    S = qkv.shape[0]
    D = head_dim
    t = _pick_tile(S, seq_tile, _sublane(qkv.dtype))
    grid = (num_heads, S // t)
    return pl.pallas_call(
        _rope_kernel,
        out_shape=jax.ShapeDtypeStruct((num_heads, S, D), qkv.dtype),
        grid_spec=pltpu.PrefetchScalarGridSpec(
            num_scalar_prefetch=0,
            grid=grid,
            in_specs=[
                pl.BlockSpec((t, D), lambda h, si: (si, col_base_blk + h)),
                pl.BlockSpec((D, D), lambda h, si: (0, 0)),
                pl.BlockSpec((t, D), lambda h, si: (si, 0)),
                pl.BlockSpec((t, D), lambda h, si: (si, 0)),
            ],
            out_specs=pl.BlockSpec((1, t, D), lambda h, si: (h, si, 0)),
        ),
        compiler_params=pltpu.CompilerParams(
            dimension_semantics=("parallel", "parallel")),
    )(qkv, rot_p, cos, sin)


# ----------------------------------------------------------------------------
# Flash-style causal GQA attention (triangular schedule, G-stacked matmuls)
#   q_rot: [Hq, S, D]  (RoPE + scale already applied)
#   k_rot: [Hkv, S, D] (RoPE already applied)
#   qkv:   [S, W]      (raw fused projection; V is sliced out via BlockSpec)
#   grid = (Hkv, n_tri) with scalar-prefetched (qi, ki<=qi) tables.
# ----------------------------------------------------------------------------
def _flash_attn_kernel(qi_tbl, ki_tbl, q_ref, k_ref, v_ref, o_ref,
                       m_sc, l_sc, acc_sc, *, groups, q_tile, head_dim,
                       approx_recip):
    s_idx = pl.program_id(1)
    qi = qi_tbl[s_idx]
    ki = ki_tbl[s_idx]

    @pl.when(ki == 0)                      # first KV block of this q tile
    def _init():
        m_sc[...] = jnp.full_like(m_sc, -jnp.inf)
        l_sc[...] = jnp.zeros_like(l_sc)
        acc_sc[...] = jnp.zeros_like(acc_sc)

    def _update(masked):
        f32 = jnp.float32
        G, t, D = groups, q_tile, head_dim
        q = q_ref[...].reshape(G * t, D)          # G-stacked, rope+scale done
        k = k_ref[0]                               # (t, D), rope done
        v = v_ref[...]                             # (t, D)

        s = lax.dot_general(q, k, (((1,), (1,)), ((), ())),
                            preferred_element_type=f32)        # (G*t, t)
        if masked:
            # diagonal block: row index within the q tile vs. key column.
            row = lax.broadcasted_iota(jnp.int32, (G, t, t), 1).reshape(G * t, t)
            col = lax.broadcasted_iota(jnp.int32, (G * t, t), 1)
            s = jnp.where(col <= row, s, jnp.finfo(f32).min)

        m_old = m_sc[...]
        m_new = jnp.maximum(m_old, jnp.max(s, axis=-1, keepdims=True))
        alpha = jnp.exp(m_old - m_new)
        p = jnp.exp(s - m_new)
        l_sc[...] = alpha * l_sc[...] + jnp.sum(p, axis=-1, keepdims=True)
        acc_sc[...] = alpha * acc_sc[...] + jnp.dot(
            p.astype(v.dtype), v, preferred_element_type=f32)
        m_sc[...] = m_new

    @pl.when(ki < qi)                      # strictly below the diagonal
    def _below_diag():
        _update(masked=False)

    @pl.when(ki == qi)                     # diagonal block == last KV step
    def _diag_and_finalize():
        _update(masked=True)
        if approx_recip:
            inv_l = pl.reciprocal(l_sc[...], approx=True)
        else:
            inv_l = 1.0 / l_sc[...]
        out = acc_sc[...] * inv_l
        o_ref[...] = out.reshape(groups, q_tile, head_dim).astype(o_ref.dtype)


def flash_mha_causal(q_rot, k_rot, qkv, *, v_col_base_blk, num_kv_groups,
                     block_size=256, approx_recip=False,
                     vmem_limit_bytes=48 * 1024 * 1024):
    Hq, S, D = q_rot.shape
    Hkv = k_rot.shape[0]
    G = num_kv_groups
    assert Hq == Hkv * G

    t = _pick_tile(S, block_size, max(_sublane(q_rot.dtype), 8))
    n_t = S // t

    # Lower-triangular (qi, ki<=qi) schedule: the above-diagonal blocks that a
    # rectangular grid would have skipped with pl.when never become grid steps
    # at all, so they cost neither DMA nor pipeline overhead.
    qi_l, ki_l = [], []
    for qi in range(n_t):
        for ki in range(qi + 1):
            qi_l.append(qi)
            ki_l.append(ki)
    qi_tbl = jnp.asarray(qi_l, dtype=jnp.int32)
    ki_tbl = jnp.asarray(ki_l, dtype=jnp.int32)
    n_steps = len(qi_l)

    kernel = functools.partial(_flash_attn_kernel, groups=G, q_tile=t,
                               head_dim=D, approx_recip=approx_recip)

    # TODO(synk): when Hkv == 1 the leading parallel axis cannot feed both
    # v7x TensorCores; a per-core split of the q-tile runs would fix that.
    return pl.pallas_call(
        kernel,
        out_shape=jax.ShapeDtypeStruct((Hq, S, D), q_rot.dtype),
        grid_spec=pltpu.PrefetchScalarGridSpec(
            num_scalar_prefetch=2,
            grid=(Hkv, n_steps),
            in_specs=[
                pl.BlockSpec((G, t, D),
                             lambda hk, s, qi_t, ki_t: (hk, qi_t[s], 0)),
                pl.BlockSpec((1, t, D),
                             lambda hk, s, qi_t, ki_t: (hk, ki_t[s], 0)),
                pl.BlockSpec((t, D),
                             lambda hk, s, qi_t, ki_t: (ki_t[s],
                                                        v_col_base_blk + hk)),
            ],
            out_specs=pl.BlockSpec((G, t, D),
                                   lambda hk, s, qi_t, ki_t: (hk, qi_t[s], 0)),
            scratch_shapes=[
                pltpu.VMEM((G * t, 1), jnp.float32),   # running max
                pltpu.VMEM((G * t, 1), jnp.float32),   # running sum
                pltpu.VMEM((G * t, D), jnp.float32),   # output accumulator
            ],
        ),
        compiler_params=pltpu.CompilerParams(
            dimension_semantics=("parallel", "arbitrary"),
            vmem_limit_bytes=vmem_limit_bytes),
    )(qi_tbl, ki_tbl, q_rot, k_rot, qkv)


# ----------------------------------------------------------------------------
# Attention module (forward semantics of tensorrt_llm Attention)
# ----------------------------------------------------------------------------
class Attention:
    def __init__(self, *, hidden_size, num_attention_heads, num_key_value_heads,
                 max_position_embeddings, bias=True, rope_theta=10000.0,
                 q_scaling=1.0, dtype=jnp.float32, attn_block_size=256,
                 approx_softmax_recip=False, key=None):
        self.hidden_size = hidden_size
        self.num_heads = num_attention_heads
        self.num_key_value_heads = num_key_value_heads
        self.head_dim = hidden_size // num_attention_heads
        self.num_key_value_groups = self.num_heads // self.num_key_value_heads
        self.q_size = self.num_heads * self.head_dim
        self.kv_size = self.num_key_value_heads * self.head_dim
        self.q_scaling = q_scaling
        self.rope_theta = rope_theta
        self.max_position_embeddings = max_position_embeddings
        self.attn_block_size = attn_block_size
        self.approx_softmax_recip = approx_softmax_recip
        self.dtype = dtype

        # The fused column-sliced path (RoPE from qkv, V straight from qkv)
        # needs 128-lane-aligned per-head column blocks.
        assert self.head_dim % 128 == 0, "this Pallas path assumes head_dim % 128 == 0"
        # TODO(synk): head_dim < 128 needs a padded / gathered column layout.

        key = key if key is not None else jax.random.PRNGKey(0)
        k1, k2, k3, k4 = jax.random.split(key, 4)
        qkv_out = self.q_size + 2 * self.kv_size
        # deterministic synthetic weights (column layout [in, out])
        self.w_qkv = (0.02 * jax.random.normal(k1, (hidden_size, qkv_out))).astype(dtype)
        self.b_qkv = (0.02 * jax.random.normal(k2, (qkv_out,))).astype(dtype)
        self.w_o = (0.02 * jax.random.normal(k3, (self.q_size, hidden_size))).astype(dtype)
        self.b_o = (0.02 * jax.random.normal(k4, (hidden_size,))).astype(dtype)

    # ------------------------------------------------------------------ rope
    def _rope_tables(self, position_ids):
        d = self.head_dim
        inv_freq = 1.0 / (self.rope_theta ** (jnp.arange(0, d, 2, dtype=jnp.float32) / d))
        ang = position_ids.astype(jnp.float32)[:, None] * inv_freq[None, :]   # [S, d/2]
        cos = jnp.concatenate([jnp.cos(ang), jnp.cos(ang)], axis=-1)
        sin = jnp.concatenate([jnp.sin(ang), jnp.sin(ang)], axis=-1)
        return cos, sin

    @staticmethod
    def _rotate_half_matrix(d):
        """P such that x @ P == rotate_half(x) == concat([-x[d/2:], x[:d/2]])."""
        h = d // 2
        idx = jnp.arange(h)
        p = jnp.zeros((d, d), jnp.float32)
        p = p.at[idx + h, idx].set(-1.0)   # out[:, :h] = -x[:, h:]
        p = p.at[idx, idx + h].set(1.0)    # out[:, h:] =  x[:, :h]
        return p

    @staticmethod
    def _rotate_half(x):
        d2 = x.shape[-1] // 2
        return jnp.concatenate([-x[..., d2:], x[..., :d2]], axis=-1)

    # --------------------------------------------------------------- forward
    def forward(self, position_ids, hidden_states):
        S, _ = hidden_states.shape
        D, Hq, Hkv = self.head_dim, self.num_heads, self.num_key_value_heads

        # fused qkv projection (tiled Pallas matmul)
        qkv = linear(hidden_states, self.w_qkv, self.b_qkv)

        cos, sin = self._rope_tables(position_ids)
        scale = 1.0 / (math.sqrt(D) * self.q_scaling)
        rot_p = self._rotate_half_matrix(D)

        # RoPE pre-pass: reads the q / k column groups of qkv directly and
        # writes head-major [H, S, D] tensors.  The qk scale is folded into
        # the q-side tables (rope(x)*s == x*(s*cos) + rot(x)*(s*sin)).
        q_rot = rope_rotate_heads(qkv, rot_p, cos * scale, sin * scale,
                                  col_base_blk=0, num_heads=Hq, head_dim=D)
        k_rot = rope_rotate_heads(qkv, rot_p, cos, sin,
                                  col_base_blk=self.q_size // D,
                                  num_heads=Hkv, head_dim=D)

        # flash attention; V is sliced straight out of qkv by its BlockSpec.
        attn = flash_mha_causal(
            q_rot, k_rot, qkv,
            v_col_base_blk=(self.q_size + self.kv_size) // D,
            num_kv_groups=self.num_key_value_groups,
            block_size=self.attn_block_size,
            approx_recip=self.approx_softmax_recip)           # [Hq, S, D]

        # output projection consumes the head-major layout directly.
        return linear_from_heads(attn, self.w_o, self.b_o)

    # ---------------------------------------------------- pure-JAX reference
    def reference(self, position_ids, hidden_states):
        S, _ = hidden_states.shape
        D, Hq, Hkv = self.head_dim, self.num_heads, self.num_key_value_heads
        qkv = hidden_states @ self.w_qkv + self.b_qkv
        q = qkv[:, : self.q_size].reshape(S, Hq, D).transpose(1, 0, 2)
        k = qkv[:, self.q_size: self.q_size + self.kv_size].reshape(S, Hkv, D).transpose(1, 0, 2)
        v = qkv[:, self.q_size + self.kv_size:].reshape(S, Hkv, D).transpose(1, 0, 2)
        cos, sin = self._rope_tables(position_ids)
        q = q * cos + self._rotate_half(q) * sin
        k = k * cos + self._rotate_half(k) * sin
        k = jnp.repeat(k, self.num_key_value_groups, axis=0)
        v = jnp.repeat(v, self.num_key_value_groups, axis=0)
        scale = 1.0 / (math.sqrt(D) * self.q_scaling)
        s = jnp.einsum("hqd,hkd->hqk", q, k) * scale
        mask = jnp.tril(jnp.ones((S, S), dtype=bool))
        s = jnp.where(mask[None], s, -1e30)
        p = jax.nn.softmax(s, axis=-1)
        o = jnp.einsum("hqk,hkd->hqd", p, v)
        o = o.transpose(1, 0, 2).reshape(S, self.q_size)
        return o @ self.w_o + self.b_o


# TODO(synk): LoRA layers, fp8/nvfp4 output scaling, TP all-reduce, paged-KV
# cache / attention metadata and chunked/windowed attention have no
# synthetic-single-call equivalent and are omitted.

if __name__ == "__main__":
    hidden_size = 512      # 4 heads * head_dim 128
    num_heads = 4
    num_kv_heads = 2       # GQA group size 2
    seq = 32

    key = jax.random.PRNGKey(0)
    k_x, k_w = jax.random.split(key)

    attn = Attention(
        hidden_size=hidden_size,
        num_attention_heads=num_heads,
        num_key_value_heads=num_kv_heads,
        max_position_embeddings=128,
        bias=True,
        q_scaling=1.0,
        attn_block_size=16,   # seq=32 -> 2x2 tiles: exercises diag + off-diag paths
        key=k_w,
    )

    hidden_states = jax.random.normal(k_x, (seq, hidden_size), dtype=jnp.float32)
    position_ids = jnp.arange(seq, dtype=jnp.int32)

    out = jax.block_until_ready(attn.forward(position_ids, hidden_states))

    ref = attn.reference(position_ids, hidden_states)
    assert out.shape == (seq, hidden_size)
    err = jnp.max(jnp.abs(out - ref))
    assert jnp.allclose(out, ref, atol=2e-3, rtol=2e-3), f"max abs err {err}"

    print("KERNEL_OK")
</pallas_src>

<mosaic_0001>
module attributes {stable_mosaic.version = 11 : i64} {
  func.func @_linear_kernel(%arg0: i32, %arg1: i32, %arg2: i32, %arg3: memref<32x512xf32, #tpu.memory_space<vmem>>, %arg4: memref<512x256xf32, #tpu.memory_space<vmem>>, %arg5: memref<1x256xf32, #tpu.memory_space<vmem>>, %arg6: memref<32x256xf32, #tpu.memory_space<vmem>>, %arg7: memref<32x256xf32, #tpu.memory_space<vmem>>) attributes {dimension_semantics = [#tpu.dimension_semantics<parallel>, #tpu.dimension_semantics<parallel>, #tpu.dimension_semantics<arbitrary>], iteration_bounds = array<i64: 1, 4, 1>, scalar_prefetch = 0 : i64, scratch_operands = 1 : i64, tpu.core_type = #tpu.core_type<tc>, window_params = [{transform_indices = @transform_0, window_bounds = array<i64: 32, 512>}, {transform_indices = @transform_1, window_bounds = array<i64: 512, 256>}, {transform_indices = @transform_2, window_bounds = array<i64: 1, 256>}, {transform_indices = @transform_3, window_bounds = array<i64: 32, 256>}]} {
    %c0_i32 = arith.constant 0 : i32
    %0 = arith.cmpi eq, %arg2, %c0_i32 : i32
    %1 = arith.extui %0 : i1 to i32
    %c0_i32_0 = arith.constant 0 : i32
    %2 = arith.cmpi ne, %1, %c0_i32_0 : i32
    scf.if %2 {
      %cst_10 = arith.constant 0.000000e+00 : f32
      %12 = vector.broadcast %cst_10 : f32 to vector<32x256xf32>
      %c0_11 = arith.constant 0 : index
      %c0_12 = arith.constant 0 : index
      %13 = vector.load %arg7[%c0_11, %c0_12] : memref<32x256xf32, #tpu.memory_space<vmem>>, vector<32x256xf32>
      tpu.vector_store %arg7[%c0_11, %c0_12], %12 {strides = array<i32>} : memref<32x256xf32, #tpu.memory_space<vmem>>, vector<32x256xf32>,
    } else {
    }
    %c0 = arith.constant 0 : index
    %c0_1 = arith.constant 0 : index
    %3 = vector.load %arg7[%c0, %c0_1] : memref<32x256xf32, #tpu.memory_space<vmem>>, vector<32x256xf32>
    %c0_2 = arith.constant 0 : index
    %c0_3 = arith.constant 0 : index
    %4 = vector.load %arg3[%c0_2, %c0_3] : memref<32x512xf32, #tpu.memory_space<vmem>>, vector<32x512xf32>
    %c0_4 = arith.constant 0 : index
    %c0_5 = arith.constant 0 : index
    %5 = vector.load %arg4[%c0_4, %c0_5] : memref<512x256xf32, #tpu.memory_space<vmem>>, vector<512x256xf32>
    %cst = arith.constant dense<0.000000e+00> : vector<32x256xf32>
    %6 = tpu.matmul %4, %5, %cst {dimension_numbers = #tpu.dot_dimension_numbers<[1], [0], [0], [1], [0, 0, 1, 1], [], []>} : vector<32x512xf32>, vector<512x256xf32>, vector<32x256xf32> -> vector<32x256xf32>
    %7 = arith.addf %3, %6 : vector<32x256xf32>
    %c0_6 = arith.constant 0 : index
    %c0_7 = arith.constant 0 : index
    %8 = vector.load %arg7[%c0_6, %c0_7] : memref<32x256xf32, #tpu.memory_space<vmem>>, vector<32x256xf32>
    tpu.vector_store %arg7[%c0_6, %c0_7], %7 {strides = array<i32>} : memref<32x256xf32, #tpu.memory_space<vmem>>, vector<32x256xf32>,
    %c0_i32_8 = arith.constant 0 : i32
    %9 = arith.cmpi eq, %arg2, %c0_i32_8 : i32
    %10 = arith.extui %9 : i1 to i32
    %c0_i32_9 = arith.constant 0 : i32
    %11 = arith.cmpi ne, %10, %c0_i32_9 : i32
    scf.if %11 {
      %c0_10 = arith.constant 0 : index
      %c0_11 = arith.constant 0 : index
      %12 = vector.load %arg7[%c0_10, %c0_11] : memref<32x256xf32, #tpu.memory_space<vmem>>, vector<32x256xf32>
      %c0_12 = arith.constant 0 : index
      %c0_13 = arith.constant 0 : index
      %13 = vector.load %arg5[%c0_12, %c0_13] : memref<1x256xf32, #tpu.memory_space<vmem>>, vector<1x256xf32>
      %14 = vector.broadcast %13 : vector<1x256xf32> to vector<32x256xf32>
      %15 = arith.addf %12, %14 : vector<32x256xf32>
      %c0_14 = arith.constant 0 : index
      %c0_15 = arith.constant 0 : index
      %16 = vector.load %arg6[%c0_14, %c0_15] : memref<32x256xf32, #tpu.memory_space<vmem>>, vector<32x256xf32>
      tpu.vector_store %arg6[%c0_14, %c0_15], %15 {strides = array<i32>} : memref<32x256xf32, #tpu.memory_space<vmem>>, vector<32x256xf32>,
    } else {
    }
    return
  }
  func.func @transform_0(%arg0: i32, %arg1: i32, %arg2: i32) -> (i32, i32) {
    %c0_i32 = arith.constant 0 : i32
    return %arg0, %arg2 : i32, i32
  }
  func.func @transform_1(%arg0: i32, %arg1: i32, %arg2: i32) -> (i32, i32) {
    %c0_i32 = arith.constant 0 : i32
    return %arg2, %arg1 : i32, i32
  }
  func.func @transform_2(%arg0: i32, %arg1: i32, %arg2: i32) -> (i32, i32) {
    %c0_i32 = arith.constant 0 : i32
    %c0_i32_0 = arith.constant 0 : i32
    return %c0_i32, %arg1 : i32, i32
  }
  func.func @transform_3(%arg0: i32, %arg1: i32, %arg2: i32) -> (i32, i32) {
    %c0_i32 = arith.constant 0 : i32
    return %arg0, %arg1 : i32, i32
  }
}

</mosaic_0001>

<llo_original>
// kernel: tpu_custom_call.1
$region0: #{tpu_custom_call.1}
  #allocation0 [shape = 'u32[]', space=smem, size = 0x4, offset = 0x4, fixed_abs, tag = 'smem constant byte address 0x4 - core index']
  #allocation1 [shape = 'u32[72,128]{1,0:T(1,128)}', space=vmem, size = 0x9000, scoped, tag = 'internal scratch']
  #allocation2 [shape = 'f32[32,256]{1,0:T(8,128)}', space=vmem, size = 0x8000, scoped, tag = 'scratch operand']
  %s0 = inlined_call_operand.hbm [shape: f32[32,512], index: 0, kind: input, shape index: {}]
  %s1 = inlined_call_operand.hbm [shape: f32[512,1024], index: 1, kind: input, shape index: {}]
  %s2 = inlined_call_operand.hbm [shape: f32[1,1024], index: 2, kind: input, shape index: {}]
  %s3 = inlined_call_operand.hbm [shape: f32[32,1024], index: 3, kind: output, shape index: {}]
  %s4 = sld [smem:[#allocation0]]
  $region65: #{tpu_custom_call.1} parent=0
    _
  %s6 = ssub.s32 1, %s4
  %s7 = scalar_select 0, %s6, %s4
  $region1: #{tpu_custom_call.1} parent=0
    #allocation3 [shape = 'u8[65536]{0}', space=vmem, size = 0x10000, scoped, tag = 'input window, operand 0, single buffered']
    #allocation4 [shape = 's32[2]{0}', space=sflag, size = 0x8, scoped, tag = 'scoped memory for tpu_custom_call.1']
    #allocation5 [shape = 's32[2]{0}', space=sflag, size = 0x8, scoped, tag = 'scoped memory for tpu_custom_call.1']
    #allocation6 [shape = 'u8[1048576]{0}', space=vmem, size = 0x100000, scoped, tag = 'input window, operand 1']
    #allocation7 [shape = 's32[2]{0}', space=sflag, size = 0x8, scoped, tag = 'scoped memory for tpu_custom_call.1']
    #allocation8 [shape = 'u8[2048]{0}', space=vmem, size = 0x800, scoped, tag = 'input window, operand 2']
    #allocation9 [shape = 'u8[65536]{0}', space=vmem, size = 0x10000, scoped, tag = 'output window, operand 0']
    %8 = vsyncpa [#allocation4], 0
    %9 = vsyncpa [#allocation7], 0
    %s10 = scalar_lea.sflag [#allocation7], 1
    %11 = vsyncpa %s10, 0
    %12 = vsyncpa [#allocation5], 0
    %s13 = scalar_lea.sflag [#allocation5], 1
    %14 = vsyncpa %s13, 0
    loop: start=0, step=1, limit=6
    $region2: #{tpu_custom_call.1} parent=1 // loop_pre_header
      _
    $region3: #{tpu_custom_call.1} parent=1 // loop_header
      %s16 = sphi 0, %s20
      %p17 = scmp.ge.s32.totalorder %s16, 6
      %s23 = sphi 0, %s42
      %s24 = sphi 0, %s38
      %s25 = sphi 0, %s34
      %s26 = sphi 0, %s23
      %s27 = sphi 0, %s24
      %s28 = sphi 0, %s25
      %s29 = sphi 0, %s26
      %s30 = sphi 0, %s27
      %s31 = sphi 0, %s28
      %s47 = sphi 0, %s49
      %s50 = sphi 0, %s47
      %s51 = sphi 0, %s50
      %s67 = sphi 0, %s51
      %s75 = sphi 0, %s77
      %s78 = sphi 0, %s75
      %s79 = sphi 0, %s78
      %s95 = sphi 0, %s79
      %s101 = sphi 0, %s103
      %s104 = sphi 0, %s101
      %s105 = sphi 0, %s104
      %s121 = sphi 0, %s105
      %s129 = sphi 0, %s131
      %s132 = sphi 0, %s129
      %s133 = sphi 0, %s132
      %s149 = sphi 0, %s133
    $region4: #{tpu_custom_call.1} parent=1 // loop_header_branch
      %19 = sbr.rel (%p17) target = $region8
    $region5: #{tpu_custom_call.1} parent=1 // loop_body
      %s21 = ssub.s32 %s16, 1
      %s22 = ssub.s32 %s16, 2
      %s32 = sadd.s32 1, %s25
      %p33 = scmp.ge.s32.totalorder %s32, 1
      %s34 = scalar_select %p33, 0, %s32
      %s35 = sadd.s32 1, %s24
      %s36 = scalar_select %p33, %s35, %s24
      %p37 = scmp.ge.s32.totalorder %s36, 4
      %s38 = scalar_select %p37, 0, %s36
      %s39 = sadd.s32 1, %s23
      %s40 = scalar_select %p37, %s39, %s23
      %p41 = scmp.ge.s32.totalorder %s40, 1
      %s42 = scalar_select %p41, 0, %s40
      %s43 = ssub.s32 %s23, %s42
      %s44 = ssub.s32 %s25, %s34
      %s45 = sor.u32 %s43, %s44
      %p46 = scmp.eq.s32.totalorder %s45, 0
      %s48 = sadd.s32 %s47, 1
      %s49 = scalar_select %p46, %s47, %s48
      %p52 = pneg %p46
      %p53 = scmp.eq.s32.totalorder %s16, 3
      %p54 = por %p52, %p53
      %p55 = scmp.ne.s32.totalorder %s47, %s50
      %p56 = scmp.eq.s32.totalorder %s16, 0
      %p57 = por %p55, %p56
      %p58 = scmp.ne.s32.totalorder %s47, %s50
      %p59 = scmp.eq.s32.totalorder %s21, 3
      %p60 = por %p58, %p59
      %p61 = scmp.ne.s32.totalorder %s50, %s51
      %p62 = scmp.eq.s32.totalorder %s21, 0
      %p63 = por %p61, %p62
      %p64 = scmp.ne.s32.totalorder %s50, %s51
      %p65 = scmp.eq.s32.totalorder %s22, 3
      %p66 = por %p64, %p65
      %p68 = scmp.ne.s32.totalorder %s51, %s67
      %p69 = scmp.eq.s32.totalorder %s22, 0
      %p70 = por %p68, %p69
      %s71 = ssub.s32 %s25, %s34
      %s72 = ssub.s32 %s24, %s38
      %s73 = sor.u32 %s71, %s72
      %p74 = scmp.eq.s32.totalorder %s73, 0
      %s76 = sadd.s32 %s75, 1
      %s77 = scalar_select %p74, %s75, %s76
      %p80 = pneg %p74
      %p81 = scmp.eq.s32.totalorder %s16, 3
      %p82 = por %p80, %p81
      %p83 = scmp.ne.s32.totalorder %s75, %s78
      %p84 = scmp.eq.s32.totalorder %s16, 0
      %p85 = por %p83, %p84
      %p86 = scmp.ne.s32.totalorder %s75, %s78
      %p87 = scmp.eq.s32.totalorder %s21, 3
      %p88 = por %p86, %p87
      %p89 = scmp.ne.s32.totalorder %s78, %s79
      %p90 = scmp.eq.s32.totalorder %s21, 0
      %p91 = por %p89, %p90
      %p92 = scmp.ne.s32.totalorder %s78, %s79
      %p93 = scmp.eq.s32.totalorder %s22, 3
      %p94 = por %p92, %p93
      %p96 = scmp.ne.s32.totalorder %s79, %s95
      %p97 = scmp.eq.s32.totalorder %s22, 0
      %p98 = por %p96, %p97
      %s99 = ssub.s32 %s24, %s38
      %p100 = scmp.eq.s32.totalorder %s99, 0
      %s102 = sadd.s32 %s101, 1
      %s103 = scalar_select %p100, %s101, %s102
      %p106 = pneg %p100
      %p107 = scmp.eq.s32.totalorder %s16, 3
      %p108 = por %p106, %p107
      %p109 = scmp.ne.s32.totalorder %s101, %s104
      %p110 = scmp.eq.s32.totalorder %s16, 0
      %p111 = por %p109, %p110
      %p112 = scmp.ne.s32.totalorder %s101, %s104
      %p113 = scmp.eq.s32.totalorder %s21, 3
      %p114 = por %p112, %p113
      %p115 = scmp.ne.s32.totalorder %s104, %s105
      %p116 = scmp.eq.s32.totalorder %s21, 0
      %p117 = por %p115, %p116
      %p118 = scmp.ne.s32.totalorder %s104, %s105
      %p119 = scmp.eq.s32.totalorder %s22, 3
      %p120 = por %p118, %p119
      %p122 = scmp.ne.s32.totalorder %s105, %s121
      %p123 = scmp.eq.s32.totalorder %s22, 0
      %p124 = por %p122, %p123
      %s125 = ssub.s32 %s23, %s42
      %s126 = ssub.s32 %s24, %s38
      %s127 = sor.u32 %s125, %s126
      %p128 = scmp.eq.s32.totalorder %s127, 0
      %s130 = sadd.s32 %s129, 1
      %s131 = scalar_select %p128, %s129, %s130
      %p134 = pneg %p128
      %p135 = scmp.eq.s32.totalorder %s16, 3
      %p136 = por %p134, %p135
      %p137 = scmp.ne.s32.totalorder %s129, %s132
      %p138 = scmp.eq.s32.totalorder %s16, 0
      %p139 = por %p137, %p138
      %p140 = scmp.ne.s32.totalorder %s129, %s132
      %p141 = scmp.eq.s32.totalorder %s21, 3
      %p142 = por %p140, %p141
      %p143 = scmp.ne.s32.totalorder %s132, %s133
      %p144 = scmp.eq.s32.totalorder %s21, 0
      %p145 = por %p143, %p144
      %p146 = scmp.ne.s32.totalorder %s132, %s133
      %p147 = scmp.eq.s32.totalorder %s22, 3
      %p148 = por %p146, %p147
      %p150 = scmp.ne.s32.totalorder %s133, %s149
      %p151 = scmp.eq.s32.totalorder %s22, 0
      %p152 = por %p150, %p151
      %p153 = scmp.le.s32.totalorder 1, %s16
      %p154 = scmp.lt.s32.totalorder %s16, 5
      %p155 = pnand %p153, %p154
      %p156 = pneg %p155
      // Predicated region
      $region9: #{tpu_custom_call.1} parent=5 // pred_check
        _
      $region10: #{tpu_custom_call.1} parent=5 // pred_check_branch
        %158 = sbr.rel (%p155) target = $region12
      $region11: #{tpu_custom_call.1} parent=5 // pred_region
        %s159 = ssub.s32 %s16, 1
        // Predicated region
        $region13: #{tpu_custom_call.1} parent=11 // pred_check
          %p160 = pneg %p63
        $region14: #{tpu_custom_call.1} parent=11 // pred_check_branch
          %162 = sbr.rel (%p160) target = $region16
        $region15: #{tpu_custom_call.1} parent=11 // pred_region
          %s163 = smul.u32 4, %s26
          %s164 = smul.u32 4, %s28
          %166 = vsyncadd [#allocation4], 0
          %s167 = smul.addr %s163, 4
          %s168 = sadd.s32 %s164, %s167
          %s169 = smul.addr %s168, 8
          %s170 = scalar_lea.hbm %s0, %s169
          %s171 = sshll.u32 %s170, 4
          %s172 = int_to_ptr.hbm [resolvable:$true] %s171
          %s173 = sshll.u32 [#allocation3], 4
          %s174 = int_to_ptr.vmem [resolvable:$true] %s173
          %179 = dma.hbm_to_vmem [thread:$0]  %s172, 2048, %s174, [#allocation4], 512, 512, 32
        $region16: #{tpu_custom_call.1} parent=11 // pred_fallthru
          _
      $region12: #{tpu_custom_call.1} parent=5 // pred_fallthru
        _
      %p180 = scmp.lt.s32.totalorder %s16, 4
      // Predicated region
      $region17: #{tpu_custom_call.1} parent=5 // pred_check
        %p181 = pneg %p180
      $region18: #{tpu_custom_call.1} parent=5 // pred_check_branch
        %183 = sbr.rel (%p181) target = $region20
      $region19: #{tpu_custom_call.1} parent=5 // pred_region
        // Predicated region
        $region21: #{tpu_custom_call.1} parent=19 // pred_check
          %p184 = pneg %p85
        $region22: #{tpu_custom_call.1} parent=19 // pred_check_branch
          %186 = sbr.rel (%p184) target = $region24
        $region23: #{tpu_custom_call.1} parent=19 // pred_region
          %s187 = sand.u32 %s16, 1
          %s188 = scalar_lea.sflag [#allocation7], %s187
          %s189 = sand.u32 %s75, 1
          %s190 = smul.addr %s189, 1024
          %s191 = scalar_lea.vmem [#allocation6], %s190
          %s192 = smul.u32 64, %s25
          %s193 = smul.u32 2, %s24
          %195 = vsyncadd %s188, 0
          %s196 = smul.addr %s192, 8
          %s197 = sadd.s32 %s193, %s196
          %s198 = smul.addr %s197, 8
          %s199 = scalar_lea.hbm %s1, %s198
          %s200 = sshll.u32 %s199, 4
          %s201 = int_to_ptr.hbm [resolvable:$true] %s200
          %s202 = sshll.u32 %s191, 4
          %s203 = int_to_ptr.vmem [resolvable:$true] %s202
          %208 = dma.hbm_to_vmem [thread:$0]  %s201, 16384, %s203, %s188, 1024, 256, 16
        $region24: #{tpu_custom_call.1} parent=19 // pred_fallthru
          _
        // Predicated region
        $region25: #{tpu_custom_call.1} parent=19 // pred_check
          %p209 = pneg %p111
        $region26: #{tpu_custom_call.1} parent=19 // pred_check_branch
          %211 = sbr.rel (%p209) target = $region28
        $region27: #{tpu_custom_call.1} parent=19 // pred_region
          %s212 = sand.u32 %s16, 1
          %s213 = scalar_lea.sflag [#allocation7], %s212
          %s214 = sand.u32 %s101, 1
          %s215 = smul.addr %s214, 2
          %s216 = scalar_lea.vmem [#allocation8], %s215
          %s217 = smul.u32 2, %s24
          %219 = vsyncadd %s213, 0
          %s220 = scalar_lea.hbm %s2, %s217
          %s222 = sshll.u32 %s220, 4
          %s223 = int_to_ptr.hbm [resolvable:$true] %s222
          %s224 = sshll.u32 %s216, 4
          %s225 = int_to_ptr.vmem [resolvable:$true] %s224
          %227 = dma.hbm_to_vmem [thread:$0]  %s223, 32, %s225, %s213
        $region28: #{tpu_custom_call.1} parent=19 // pred_fallthru
          _
      $region20: #{tpu_custom_call.1} parent=5 // pred_fallthru
        _
      %p228 = scmp.le.s32.totalorder 1, %s16
      %p229 = scmp.lt.s32.totalorder %s16, 5
      %p230 = pnand %p228, %p229
      %p231 = pneg %p230
      // Predicated region
      $region29: #{tpu_custom_call.1} parent=5 // pred_check
        _
      $region30: #{tpu_custom_call.1} parent=5 // pred_check_branch
        %233 = sbr.rel (%p230) target = $region32
      $region31: #{tpu_custom_call.1} parent=5 // pred_region
        %s234 = ssub.s32 %s16, 1
        // Predicated region
        $region33: #{tpu_custom_call.1} parent=31 // pred_check
          %p235 = pneg %p63
        $region34: #{tpu_custom_call.1} parent=31 // pred_check_branch
          %237 = sbr.rel (%p235) target = $region36
        $region35: #{tpu_custom_call.1} parent=31 // pred_region
          %239 = dma.done [#allocation4], 2048
        $region36: #{tpu_custom_call.1} parent=31 // pred_fallthru
          _
        %s240 = sand.u32 %s21, 1
        %s241 = scalar_lea.sflag [#allocation7], %s240
        %s242 = sand.u32 %s78, 1
        %s243 = smul.addr %s242, 1024
        %s244 = scalar_lea.vmem [#allocation6], %s243
        // Predicated region
        $region37: #{tpu_custom_call.1} parent=31 // pred_check
          %p245 = pneg %p91
        $region38: #{tpu_custom_call.1} parent=31 // pred_check_branch
          %247 = sbr.rel (%p245) target = $region40
        $region39: #{tpu_custom_call.1} parent=31 // pred_region
          %249 = dma.done %s241, 16384
        $region40: #{tpu_custom_call.1} parent=31 // pred_fallthru
          _
        %s250 = sand.u32 %s21, 1
        %s251 = scalar_lea.sflag [#allocation7], %s250
        %s252 = sand.u32 %s104, 1
        %s253 = smul.addr %s252, 2
        %s254 = scalar_lea.vmem [#allocation8], %s253
        // Predicated region
        $region41: #{tpu_custom_call.1} parent=31 // pred_check
          %p255 = pneg %p117
        $region42: #{tpu_custom_call.1} parent=31 // pred_check_branch
          %257 = sbr.rel (%p255) target = $region44
        $region43: #{tpu_custom_call.1} parent=31 // pred_region
          %259 = dma.done %s251, 32
        $region44: #{tpu_custom_call.1} parent=31 // pred_fallthru
          _
        %p260 = pneg %p63
        %p261 = pneg %p60
        %s262 = sand.u32 %s21, 1
        %s263 = scalar_lea.sflag [#allocation7], %s262
        %s264 = sand.u32 %s78, 1
        %s265 = smul.addr %s264, 1024
        %s266 = scalar_lea.vmem [#allocation6], %s265
        %p267 = pneg %p91
        %p268 = pneg %p88
        %s269 = sand.u32 %s21, 1
        %s270 = scalar_lea.sflag [#allocation7], %s269
        %s271 = sand.u32 %s104, 1
        %s272 = smul.addr %s271, 2
        %s273 = scalar_lea.vmem [#allocation8], %s272
        %p274 = pneg %p117
        %p275 = pneg %p114
        %p276 = pneg %p145
        %p277 = pneg %p142
        %s278 = sand.u32 %s132, 1
        %s279 = scalar_lea.sflag [#allocation5], %s278
        %s280 = sand.u32 %s132, 1
        %s281 = smul.addr %s280, 64
        %s282 = scalar_lea.vmem [#allocation9], %s281
        %s283 = smul.u32 4, %s26
        %s284 = smul.u32 4, %s28
        %s285 = smul.u32 64, %s28
        %s286 = smul.u32 2, %s27
        %s287 = smul.u32 2, %s27
        %s288 = smul.u32 4, %s26
        %s289 = smul.u32 2, %s27
        %p290 = scmp.eq.s32.totalorder %s28, 0
        // Predicated region
        $region45: #{tpu_custom_call.1} parent=31 // pred_check
          %p291 = pneg %p290
        $region46: #{tpu_custom_call.1} parent=31 // pred_check_branch
          %293 = sbr.rel (%p291) target = $region48
        $region47: #{tpu_custom_call.1} parent=31 // pred_region
          %294 = vst [vmem:[#allocation2] sm:$0xff] 0.0
          %295 = vst [vmem:[#allocation2 + $0x8] sm:$0xff] 0.0
          %296 = vst [vmem:[#allocation2 + $0x10] sm:$0xff] 0.0
          %297 = vst [vmem:[#allocation2 + $0x18] sm:$0xff] 0.0
          %298 = vst [vmem:[#allocation2 + $0x20] sm:$0xff] 0.0
          %299 = vst [vmem:[#allocation2 + $0x28] sm:$0xff] 0.0
          %300 = vst [vmem:[#allocation2 + $0x30] sm:$0xff] 0.0
          %301 = vst [vmem:[#allocation2 + $0x38] sm:$0xff] 0.0
        $region48: #{tpu_custom_call.1} parent=31 // pred_fallthru
          _
        %v302 = vld [vmem:[#allocation2] sm:$0xff]
        %v303 = vld [vmem:[#allocation2 + $0x8] sm:$0xff]
        %v304 = vld [vmem:[#allocation2 + $0x10] sm:$0xff]
        %v305 = vld [vmem:[#allocation2 + $0x18] sm:$0xff]
        %v306 = vld [vmem:[#allocation2 + $0x20] sm:$0xff]
        %v307 = vld [vmem:[#allocation2 + $0x28] sm:$0xff]
        %v308 = vld [vmem:[#allocation2 + $0x30] sm:$0xff]
        %v309 = vld [vmem:[#allocation2 + $0x38] sm:$0xff]
        %v310 = vld [vmem:[#allocation3] sm:$0xff]
        %v311 = vld [vmem:[#allocation3 + $0x8] sm:$0xff]
        %v312 = vld [vmem:[#allocation3 + $0x10] sm:$0xff]
        %v313 = vld [vmem:[#allocation3 + $0x18] sm:$0xff]
        %v314 = vld [vmem:[#allocation3 + $0x20] sm:$0xff]
        %v315 = vld [vmem:[#allocation3 + $0x28] sm:$0xff]
        %v316 = vld [vmem:[#allocation3 + $0x30] sm:$0xff]
        %v317 = vld [vmem:[#allocation3 + $0x38] sm:$0xff]
        %v318 = vld [vmem:[#allocation3 + $0x40] sm:$0xff]
        %v319 = vld [vmem:[#allocation3 + $0x48] sm:$0xff]
        %v320 = vld [vmem:[#allocation3 + $0x50] sm:$0xff]
        %v321 = vld [vmem:[#allocation3 + $0x58] sm:$0xff]
        %v322 = vld [vmem:[#allocation3 + $0x60] sm:$0xff]
        %v323 = vld [vmem:[#allocation3 + $0x68] sm:$0xff]
        %v324 = vld [vmem:[#allocation3 + $0x70] sm:$0xff]
        %v325 = vld [vmem:[#allocation3 + $0x78] sm:$0xff]
        %v326 = vld [vmem:[%s244] sm:$0xff]
        %v327 = vld [vmem:[%s244 + $0x8] sm:$0xff]
        %v328 = vld [vmem:[%s244 + $0x10] sm:$0xff]
        %v329 = vld [vmem:[%s244 + $0x18] sm:$0xff]
        %v330 = vld [vmem:[%s244 + $0x20] sm:$0xff]
        %v331 = vld [vmem:[%s244 + $0x28] sm:$0xff]
        %v332 = vld [vmem:[%s244 + $0x30] sm:$0xff]
        %v333 = vld [vmem:[%s244 + $0x38] sm:$0xff]
        %v334 = vld [vmem:[%s244 + $0x40] sm:$0xff]
        %v335 = vld [vmem:[%s244 + $0x48] sm:$0xff]
        %v336 = vld [vmem:[%s244 + $0x50] sm:$0xff]
        %v337 = vld [vmem:[%s244 + $0x58] sm:$0xff]
        %v338 = vld [vmem:[%s244 + $0x60] sm:$0xff]
        %v339 = vld [vmem:[%s244 + $0x68] sm:$0xff]
        %v340 = vld [vmem:[%s244 + $0x70] sm:$0xff]
        %v341 = vld [vmem:[%s244 + $0x78] sm:$0xff]
        %v342 = vld [vmem:[%s244 + $0x80] sm:$0xff]
        %v343 = vld [vmem:[%s244 + $0x88] sm:$0xff]
        %v344 = vld [vmem:[%s244 + $0x90] sm:$0xff]
        %v345 = vld [vmem:[%s244 + $0x98] sm:$0xff]
        %v346 = vld [vmem:[%s244 + $0xa0] sm:$0xff]
        %v347 = vld [vmem:[%s244 + $0xa8] sm:$0xff]
        %v348 = vld [vmem:[%s244 + $0xb0] sm:$0xff]
        %v349 = vld [vmem:[%s244 + $0xb8] sm:$0xff]
        %v350 = vld [vmem:[%s244 + $0xc0] sm:$0xff]
        %v351 = vld [vmem:[%s244 + $0xc8] sm:$0xff]
        %v352 = vld [vmem:[%s244 + $0xd0] sm:$0xff]
        %v353 = vld [vmem:[%s244 + $0xd8] sm:$0xff]
        %v354 = vld [vmem:[%s244 + $0xe0] sm:$0xff]
        %v355 = vld [vmem:[%s244 + $0xe8] sm:$0xff]
        %v356 = vld [vmem:[%s244 + $0xf0] sm:$0xff]
        %v357 = vld [vmem:[%s244 + $0xf8] sm:$0xff]
        %v358 = vld [vmem:[%s244 + $0x100] sm:$0xff]
        %v359 = vld [vmem:[%s244 + $0x108] sm:$0xff]
        %v360 = vld [vmem:[%s244 + $0x110] sm:$0xff]
        %v361 = vld [vmem:[%s244 + $0x118] sm:$0xff]
        %v362 = vld [vmem:[%s244 + $0x120] sm:$0xff]
        %v363 = vld [vmem:[%s244 + $0x128] sm:$0xff]
        %v364 = vld [vmem:[%s244 + $0x130] sm:$0xff]
        %v365 = vld [vmem:[%s244 + $0x138] sm:$0xff]
        %v366 = vld [vmem:[%s244 + $0x140] sm:$0xff]
        %v367 = vld [vmem:[%s244 + $0x148] sm:$0xff]
        %v368 = vld [vmem:[%s244 + $0x150] sm:$0xff]
        %v369 = vld [vmem:[%s244 + $0x158] sm:$0xff]
        %v370 = vld [vmem:[%s244 + $0x160] sm:$0xff]
        %v371 = vld [vmem:[%s244 + $0x168] sm:$0xff]
        %v372 = vld [vmem:[%s244 + $0x170] sm:$0xff]
        %v373 = vld [vmem:[%s244 + $0x178] sm:$0xff]
        %v374 = vld [vmem:[%s244 + $0x180] sm:$0xff]
        %v375 = vld [vmem:[%s244 + $0x188] sm:$0xff]
        %v376 = vld [vmem:[%s244 + $0x190] sm:$0xff]
        %v377 = vld [vmem:[%s244 + $0x198] sm:$0xff]
        %v378 = vld [vmem:[%s244 + $0x1a0] sm:$0xff]
        %v379 = vld [vmem:[%s244 + $0x1a8] sm:$0xff]
        %v380 = vld [vmem:[%s244 + $0x1b0] sm:$0xff]
        %v381 = vld [vmem:[%s244 + $0x1b8] sm:$0xff]
        %v382 = vld [vmem:[%s244 + $0x1c0] sm:$0xff]
        %v383 = vld [vmem:[%s244 + $0x1c8] sm:$0xff]
        %v384 = vld [vmem:[%s244 + $0x1d0] sm:$0xff]
        %v385 = vld [vmem:[%s244 + $0x1d8] sm:$0xff]
        %v386 = vld [vmem:[%s244 + $0x1e0] sm:$0xff]
        %v387 = vld [vmem:[%s244 + $0x1e8] sm:$0xff]
        %v388 = vld [vmem:[%s244 + $0x1f0] sm:$0xff]
        %v389 = vld [vmem:[%s244 + $0x1f8] sm:$0xff]
        %v390 = vld [vmem:[%s244 + $0x200] sm:$0xff]
        %v391 = vld [vmem:[%s244 + $0x208] sm:$0xff]
        %v392 = vld [vmem:[%s244 + $0x210] sm:$0xff]
        %v393 = vld [vmem:[%s244 + $0x218] sm:$0xff]
        %v394 = vld [vmem:[%s244 + $0x220] sm:$0xff]
        %v395 = vld [vmem:[%s244 + $0x228] sm:$0xff]
        %v396 = vld [vmem:[%s244 + $0x230] sm:$0xff]
        %v397 = vld [vmem:[%s244 + $0x238] sm:$0xff]
        %v398 = vld [vmem:[%s244 + $0x240] sm:$0xff]
        %v399 = vld [vmem:[%s244 + $0x248] sm:$0xff]
        %v400 = vld [vmem:[%s244 + $0x250] sm:$0xff]
        %v401 = vld [vmem:[%s244 + $0x258] sm:$0xff]
        %v402 = vld [vmem:[%s244 + $0x260] sm:$0xff]
        %v403 = vld [vmem:[%s244 + $0x268] sm:$0xff]
        %v404 = vld [vmem:[%s244 + $0x270] sm:$0xff]
        %v405 = vld [vmem:[%s244 + $0x278] sm:$0xff]
        %v406 = vld [vmem:[%s244 + $0x280] sm:$0xff]
        %v407 = vld [vmem:[%s244 + $0x288] sm:$0xff]
        %v408 = vld [vmem:[%s244 + $0x290] sm:$0xff]
        %v409 = vld [vmem:[%s244 + $0x298] sm:$0xff]
        %v410 = vld [vmem:[%s244 + $0x2a0] sm:$0xff]
        %v411 = vld [vmem:[%s244 + $0x2a8] sm:$0xff]
        %v412 = vld [vmem:[%s244 + $0x2b0] sm:$0xff]
        %v413 = vld [vmem:[%s244 + $0x2b8] sm:$0xff]
        %v414 = vld [vmem:[%s244 + $0x2c0] sm:$0xff]
        %v415 = vld [vmem:[%s244 + $0x2c8] sm:$0xff]
        %v416 = vld [vmem:[%s244 + $0x2d0] sm:$0xff]
        %v417 = vld [vmem:[%s244 + $0x2d8] sm:$0xff]
        %v418 = vld [vmem:[%s244 + $0x2e0] sm:$0xff]
        %v419 = vld [vmem:[%s244 + $0x2e8] sm:$0xff]
        %v420 = vld [vmem:[%s244 + $0x2f0] sm:$0xff]
        %v421 = vld [vmem:[%s244 + $0x2f8] sm:$0xff]
        %v422 = vld [vmem:[%s244 + $0x300] sm:$0xff]
        %v423 = vld [vmem:[%s244 + $0x308] sm:$0xff]
        %v424 = vld [vmem:[%s244 + $0x310] sm:$0xff]
        %v425 = vld [vmem:[%s244 + $0x318] sm:$0xff]
        %v426 = vld [vmem:[%s244 + $0x320] sm:$0xff]
        %v427 = vld [vmem:[%s244 + $0x328] sm:$0xff]
        %v428 = vld [vmem:[%s244 + $0x330] sm:$0xff]
        %v429 = vld [vmem:[%s244 + $0x338] sm:$0xff]
        %v430 = vld [vmem:[%s244 + $0x340] sm:$0xff]
        %v431 = vld [vmem:[%s244 + $0x348] sm:$0xff]
        %v432 = vld [vmem:[%s244 + $0x350] sm:$0xff]
        %v433 = vld [vmem:[%s244 + $0x358] sm:$0xff]
        %v434 = vld [vmem:[%s244 + $0x360] sm:$0xff]
        %v435 = vld [vmem:[%s244 + $0x368] sm:$0xff]
        %v436 = vld [vmem:[%s244 + $0x370] sm:$0xff]
        %v437 = vld [vmem:[%s244 + $0x378] sm:$0xff]
        %v438 = vld [vmem:[%s244 + $0x380] sm:$0xff]
        %v439 = vld [vmem:[%s244 + $0x388] sm:$0xff]
        %v440 = vld [vmem:[%s244 + $0x390] sm:$0xff]
        %v441 = vld [vmem:[%s244 + $0x398] sm:$0xff]
        %v442 = vld [vmem:[%s244 + $0x3a0] sm:$0xff]
        %v443 = vld [vmem:[%s244 + $0x3a8] sm:$0xff]
        %v444 = vld [vmem:[%s244 + $0x3b0] sm:$0xff]
        %v445 = vld [vmem:[%s244 + $0x3b8] sm:$0xff]
        %v446 = vld [vmem:[%s244 + $0x3c0] sm:$0xff]
        %v447 = vld [vmem:[%s244 + $0x3c8] sm:$0xff]
        %v448 = vld [vmem:[%s244 + $0x3d0] sm:$0xff]
        %v449 = vld [vmem:[%s244 + $0x3d8] sm:$0xff]
        %v450 = vld [vmem:[%s244 + $0x3e0] sm:$0xff]
        %v451 = vld [vmem:[%s244 + $0x3e8] sm:$0xff]
        %v452 = vld [vmem:[%s244 + $0x3f0] sm:$0xff]
        %v453 = vld [vmem:[%s244 + $0x3f8] sm:$0xff]
        %454 = vmatpush.msra.mxu0 %v356
        %455 = vmatpush.msra.mxu0 %v354
        %456 = vmatpush.msra.mxu0 %v352
        %457 = vmatpush.msra.mxu0 %v350
        %458 = vmatpush.msra.mxu0 %v348
        %459 = vmatpush.msra.mxu0 %v346
        %460 = vmatpush.msra.mxu0 %v344
        %461 = vmatpush.msra.mxu0 %v342
        %462 = vmatpush.msra.mxu0 %v340
        %463 = vmatpush.msra.mxu0 %v338
        %464 = vmatpush.msra.mxu0 %v336
        %465 = vmatpush.msra.mxu0 %v334
        %466 = vmatpush.msra.mxu0 %v332
        %467 = vmatpush.msra.mxu0 %v330
        %468 = vmatpush.msra.mxu0 %v328
        %469 = vmatpush.msra.mxu0 %v326
        %470 = vmatmul.f32.gmra.mxu0 %v310
        %v471 = vpop.f32.mrf.mxu0
        %v472 = vadd.f32 0.0, %v471
        %473 = vmatmul.f32.gmra.mxu0 %v314
        %v474 = vpop.f32.mrf.mxu0
        %v475 = vadd.f32 0.0, %v474
        %476 = vmatmul.f32.gmra.mxu0 %v318
        %v477 = vpop.f32.mrf.mxu0
        %v478 = vadd.f32 0.0, %v477
        %479 = vmatmul.f32.gmra.mxu0 %v322
        %v480 = vpop.f32.mrf.mxu0
        %v481 = vadd.f32 0.0, %v480
        %482 = vdwg.mxu0
        %483 = vmatpush.msra.mxu0 %v388
        %484 = vmatpush.msra.mxu0 %v386
        %485 = vmatpush.msra.mxu0 %v384
        %486 = vmatpush.msra.mxu0 %v382
        %487 = vmatpush.msra.mxu0 %v380
        %488 = vmatpush.msra.mxu0 %v378
        %489 = vmatpush.msra.mxu0 %v376
        %490 = vmatpush.msra.mxu0 %v374
        %491 = vmatpush.msra.mxu0 %v372
        %492 = vmatpush.msra.mxu0 %v370
        %493 = vmatpush.msra.mxu0 %v368
        %494 = vmatpush.msra.mxu0 %v366
        %495 = vmatpush.msra.mxu0 %v364
        %496 = vmatpush.msra.mxu0 %v362
        %497 = vmatpush.msra.mxu0 %v360
        %498 = vmatpush.msra.mxu0 %v358
        %499 = vmatmul.f32.gmra.mxu0 %v311
        %v500 = vpop.f32.mrf.mxu0
        %v501 = vadd.f32 %v472, %v500
        %502 = vmatmul.f32.gmra.mxu0 %v315
        %v503 = vpop.f32.mrf.mxu0
        %v504 = vadd.f32 %v475, %v503
        %505 = vmatmul.f32.gmra.mxu0 %v319
        %v506 = vpop.f32.mrf.mxu0
        %v507 = vadd.f32 %v478, %v506
        %508 = vmatmul.f32.gmra.mxu0 %v323
        %v509 = vpop.f32.mrf.mxu0
        %v510 = vadd.f32 %v481, %v509
        %511 = vdwg.mxu0
        %512 = vmatpush.msra.mxu0 %v420
        %513 = vmatpush.msra.mxu0 %v418
        %514 = vmatpush.msra.mxu0 %v416
        %515 = vmatpush.msra.mxu0 %v414
        %516 = vmatpush.msra.mxu0 %v412
        %517 = vmatpush.msra.mxu0 %v410
        %518 = vmatpush.msra.mxu0 %v408
        %519 = vmatpush.msra.mxu0 %v406
        %520 = vmatpush.msra.mxu0 %v404
        %521 = vmatpush.msra.mxu0 %v402
        %522 = vmatpush.msra.mxu0 %v400
        %523 = vmatpush.msra.mxu0 %v398
        %524 = vmatpush.msra.mxu0 %v396
        %525 = vmatpush.msra.mxu0 %v394
        %526 = vmatpush.msra.mxu0 %v392
        %527 = vmatpush.msra.mxu0 %v390
        %528 = vmatmul.f32.gmra.mxu0 %v312
        %v529 = vpop.f32.mrf.mxu0
        %v530 = vadd.f32 %v501, %v529
        %531 = vmatmul.f32.gmra.mxu0 %v316
        %v532 = vpop.f32.mrf.mxu0
        %v533 = vadd.f32 %v504, %v532
        %534 = vmatmul.f32.gmra.mxu0 %v320
        %v535 = vpop.f32.mrf.mxu0
        %v536 = vadd.f32 %v507, %v535
        %537 = vmatmul.f32.gmra.mxu0 %v324
        %v538 = vpop.f32.mrf.mxu0
        %v539 = vadd.f32 %v510, %v538
        %540 = vdwg.mxu0
        %541 = vmatpush.msra.mxu0 %v452
        %542 = vmatpush.msra.mxu0 %v450
        %543 = vmatpush.msra.mxu0 %v448
        %544 = vmatpush.msra.mxu0 %v446
        %545 = vmatpush.msra.mxu0 %v444
        %546 = vmatpush.msra.mxu0 %v442
        %547 = vmatpush.msra.mxu0 %v440
        %548 = vmatpush.msra.mxu0 %v438
        %549 = vmatpush.msra.mxu0 %v436
        %550 = vmatpush.msra.mxu0 %v434
        %551 = vmatpush.msra.mxu0 %v432
        %552 = vmatpush.msra.mxu0 %v430
        %553 = vmatpush.msra.mxu0 %v428
        %554 = vmatpush.msra.mxu0 %v426
        %555 = vmatpush.msra.mxu0 %v424
        %556 = vmatpush.msra.mxu0 %v422
        %557 = vmatmul.f32.gmra.mxu0 %v313
        %v558 = vpop.f32.mrf.mxu0
        %v559 = vadd.f32 %v530, %v558
        %560 = vmatmul.f32.gmra.mxu0 %v317
        %v561 = vpop.f32.mrf.mxu0
        %v562 = vadd.f32 %v533, %v561
        %563 = vmatmul.f32.gmra.mxu0 %v321
        %v564 = vpop.f32.mrf.mxu0
        %v565 = vadd.f32 %v536, %v564
        %566 = vmatmul.f32.gmra.mxu0 %v325
        %v567 = vpop.f32.mrf.mxu0
        %v568 = vadd.f32 %v539, %v567
        %569 = vdwg.mxu0
        %570 = vmatpush.msra.mxu0 %v357
        %571 = vmatpush.msra.mxu0 %v355
        %572 = vmatpush.msra.mxu0 %v353
        %573 = vmatpush.msra.mxu0 %v351
        %574 = vmatpush.msra.mxu0 %v349
        %575 = vmatpush.msra.mxu0 %v347
        %576 = vmatpush.msra.mxu0 %v345
        %577 = vmatpush.msra.mxu0 %v343
        %578 = vmatpush.msra.mxu0 %v341
        %579 = vmatpush.msra.mxu0 %v339
        %580 = vmatpush.msra.mxu0 %v337
        %581 = vmatpush.msra.mxu0 %v335
        %582 = vmatpush.msra.mxu0 %v333
        %583 = vmatpush.msra.mxu0 %v331
        %584 = vmatpush.msra.mxu0 %v329
        %585 = vmatpush.msra.mxu0 %v327
        %586 = vmatmul.f32.gmra.mxu0 %v310
        %v587 = vpop.f32.mrf.mxu0
        %v588 = vadd.f32 0.0, %v587
        %589 = vmatmul.f32.gmra.mxu0 %v314
        %v590 = vpop.f32.mrf.mxu0
        %v591 = vadd.f32 0.0, %v590
        %592 = vmatmul.f32.gmra.mxu0 %v318
        %v593 = vpop.f32.mrf.mxu0
        %v594 = vadd.f32 0.0, %v593
        %595 = vmatmul.f32.gmra.mxu0 %v322
        %v596 = vpop.f32.mrf.mxu0
        %v597 = vadd.f32 0.0, %v596
        %598 = vdwg.mxu0
        %599 = vmatpush.msra.mxu0 %v389
        %600 = vmatpush.msra.mxu0 %v387
        %601 = vmatpush.msra.mxu0 %v385
        %602 = vmatpush.msra.mxu0 %v383
        %603 = vmatpush.msra.mxu0 %v381
        %604 = vmatpush.msra.mxu0 %v379
        %605 = vmatpush.msra.mxu0 %v377
        %606 = vmatpush.msra.mxu0 %v375
        %607 = vmatpush.msra.mxu0 %v373
        %608 = vmatpush.msra.mxu0 %v371
        %609 = vmatpush.msra.mxu0 %v369
        %610 = vmatpush.msra.mxu0 %v367
        %611 = vmatpush.msra.mxu0 %v365
        %612 = vmatpush.msra.mxu0 %v363
        %613 = vmatpush.msra.mxu0 %v361
        %614 = vmatpush.msra.mxu0 %v359
        %615 = vmatmul.f32.gmra.mxu0 %v311
        %v616 = vpop.f32.mrf.mxu0
        %v617 = vadd.f32 %v588, %v616
        %618 = vmatmul.f32.gmra.mxu0 %v315
        %v619 = vpop.f32.mrf.mxu0
        %v620 = vadd.f32 %v591, %v619
        %621 = vmatmul.f32.gmra.mxu0 %v319
        %v622 = vpop.f32.mrf.mxu0
        %v623 = vadd.f32 %v594, %v622
        %624 = vmatmul.f32.gmra.mxu0 %v323
        %v625 = vpop.f32.mrf.mxu0
        %v626 = vadd.f32 %v597, %v625
        %627 = vdwg.mxu0
        %628 = vmatpush.msra.mxu0 %v421
        %629 = vmatpush.msra.mxu0 %v419
        %630 = vmatpush.msra.mxu0 %v417
        %631 = vmatpush.msra.mxu0 %v415
        %632 = vmatpush.msra.mxu0 %v413
        %633 = vmatpush.msra.mxu0 %v411
        %634 = vmatpush.msra.mxu0 %v409
        %635 = vmatpush.msra.mxu0 %v407
        %636 = vmatpush.msra.mxu0 %v405
        %637 = vmatpush.msra.mxu0 %v403
        %638 = vmatpush.msra.mxu0 %v401
        %639 = vmatpush.msra.mxu0 %v399
        %640 = vmatpush.msra.mxu0 %v397
        %641 = vmatpush.msra.mxu0 %v395
        %642 = vmatpush.msra.mxu0 %v393
        %643 = vmatpush.msra.mxu0 %v391
        %644 = vmatmul.f32.gmra.mxu0 %v312
        %v645 = vpop.f32.mrf.mxu0
        %v646 = vadd.f32 %v617, %v645
        %647 = vmatmul.f32.gmra.mxu0 %v316
        %v648 = vpop.f32.mrf.mxu0
        %v649 = vadd.f32 %v620, %v648
        %650 = vmatmul.f32.gmra.mxu0 %v320
        %v651 = vpop.f32.mrf.mxu0
        %v652 = vadd.f32 %v623, %v651
        %653 = vmatmul.f32.gmra.mxu0 %v324
        %v654 = vpop.f32.mrf.mxu0
        %v655 = vadd.f32 %v626, %v654
        %656 = vdwg.mxu0
        %657 = vmatpush.msra.mxu0 %v453
        %658 = vmatpush.msra.mxu0 %v451
        %659 = vmatpush.msra.mxu0 %v449
        %660 = vmatpush.msra.mxu0 %v447
        %661 = vmatpush.msra.mxu0 %v445
        %662 = vmatpush.msra.mxu0 %v443
        %663 = vmatpush.msra.mxu0 %v441
        %664 = vmatpush.msra.mxu0 %v439
        %665 = vmatpush.msra.mxu0 %v437
        %666 = vmatpush.msra.mxu0 %v435
        %667 = vmatpush.msra.mxu0 %v433
        %668 = vmatpush.msra.mxu0 %v431
        %669 = vmatpush.msra.mxu0 %v429
        %670 = vmatpush.msra.mxu0 %v427
        %671 = vmatpush.msra.mxu0 %v425
        %672 = vmatpush.msra.mxu0 %v423
        %673 = vmatmul.f32.gmra.mxu0 %v313
        %v674 = vpop.f32.mrf.mxu0
        %v675 = vadd.f32 %v646, %v674
        %676 = vmatmul.f32.gmra.mxu0 %v317
        %v677 = vpop.f32.mrf.mxu0
        %v678 = vadd.f32 %v649, %v677
        %679 = vmatmul.f32.gmra.mxu0 %v321
        %v680 = vpop.f32.mrf.mxu0
        %v681 = vadd.f32 %v652, %v680
        %682 = vmatmul.f32.gmra.mxu0 %v325
        %v683 = vpop.f32.mrf.mxu0
        %v684 = vadd.f32 %v655, %v683
        %685 = vdwg.mxu0
        %v686 = vadd.f32 %v302, %v559
        %v687 = vadd.f32 %v303, %v675
        %v688 = vadd.f32 %v304, %v562
        %v689 = vadd.f32 %v305, %v678
        %v690 = vadd.f32 %v306, %v565
        %v691 = vadd.f32 %v307, %v681
        %v692 = vadd.f32 %v308, %v568
        %v693 = vadd.f32 %v309, %v684
        %694 = vst [vmem:[#allocation2] sm:$0xff] %v686
        %695 = vst [vmem:[#allocation2 + $0x8] sm:$0xff] %v687
        %696 = vst [vmem:[#allocation2 + $0x10] sm:$0xff] %v688
        %697 = vst [vmem:[#allocation2 + $0x18] sm:$0xff] %v689
        %698 = vst [vmem:[#allocation2 + $0x20] sm:$0xff] %v690
        %699 = vst [vmem:[#allocation2 + $0x28] sm:$0xff] %v691
        %700 = vst [vmem:[#allocation2 + $0x30] sm:$0xff] %v692
        %701 = vst [vmem:[#allocation2 + $0x38] sm:$0xff] %v693
        // Predicated region
        $region49: #{tpu_custom_call.1} parent=31 // pred_check
          %p702 = pneg %p290
        $region50: #{tpu_custom_call.1} parent=31 // pred_check_branch
          %704 = sbr.rel (%p702) target = $region52
        $region51: #{tpu_custom_call.1} parent=31 // pred_region
          %v705 = vld [vmem:[#allocation2] sm:$0xff]
          %v706 = vld [vmem:[#allocation2 + $0x8] sm:$0xff]
          %v707 = vld [vmem:[#allocation2 + $0x10] sm:$0xff]
          %v708 = vld [vmem:[#allocation2 + $0x18] sm:$0xff]
          %v709 = vld [vmem:[#allocation2 + $0x20] sm:$0xff]
          %v710 = vld [vmem:[#allocation2 + $0x28] sm:$0xff]
          %v711 = vld [vmem:[#allocation2 + $0x30] sm:$0xff]
          %v712 = vld [vmem:[#allocation2 + $0x38] sm:$0xff]
          %v713 = vld [vmem:[%s254] sm:$0x3]
          %v715 = vperm.slane %v713, 0
          %v716 = vperm.slane %v713, 1
          %v719 = vadd.f32 %v705, %v715
          %v720 = vadd.f32 %v706, %v716
          %v721 = vadd.f32 %v707, %v715
          %v722 = vadd.f32 %v708, %v716
          %v723 = vadd.f32 %v709, %v715
          %v724 = vadd.f32 %v710, %v716
          %v725 = vadd.f32 %v711, %v715
          %v726 = vadd.f32 %v712, %v716
          %727 = vst [vmem:[%s282] sm:$0xff] %v719
          %728 = vst [vmem:[%s282 + $0x8] sm:$0xff] %v720
          %729 = vst [vmem:[%s282 + $0x10] sm:$0xff] %v721
          %730 = vst [vmem:[%s282 + $0x18] sm:$0xff] %v722
          %731 = vst [vmem:[%s282 + $0x20] sm:$0xff] %v723
          %732 = vst [vmem:[%s282 + $0x28] sm:$0xff] %v724
          %733 = vst [vmem:[%s282 + $0x30] sm:$0xff] %v725
          %734 = vst [vmem:[%s282 + $0x38] sm:$0xff] %v726
        $region52: #{tpu_custom_call.1} parent=31 // pred_fallthru
          _
        %s735 = sand.u32 %s132, 1
        %s736 = scalar_lea.sflag [#allocation5], %s735
        %s737 = sand.u32 %s132, 1
        %s738 = smul.addr %s737, 64
        %s739 = scalar_lea.vmem [#allocation9], %s738
        // Predicated region
        $region53: #{tpu_custom_call.1} parent=31 // pred_check
          %p740 = pneg %p142
        $region54: #{tpu_custom_call.1} parent=31 // pred_check_branch
          %742 = sbr.rel (%p740) target = $region56
        $region55: #{tpu_custom_call.1} parent=31 // pred_region
          %s743 = smul.u32 4, %s26
          %s744 = smul.u32 2, %s27
          %746 = vsyncadd %s736, 0
          %s747 = smul.addr %s743, 8
          %s748 = sadd.s32 %s744, %s747
          %s749 = smul.addr %s748, 8
          %s750 = scalar_lea.hbm %s3, %s749
          %s751 = sshll.u32 %s739, 4
          %s752 = int_to_ptr.vmem [resolvable:$true] %s751
          %s753 = sshll.u32 %s750, 4
          %s754 = int_to_ptr.hbm [resolvable:$true] %s753
          %759 = dma.vmem_to_hbm [thread:$0]  %s752, 1024, %s754, %s736, 256, 1024, 16
        $region56: #{tpu_custom_call.1} parent=31 // pred_fallthru
          _
      $region32: #{tpu_custom_call.1} parent=5 // pred_fallthru
        _
      %p760 = scmp.le.s32.totalorder 2, %s16
      // Predicated region
      $region57: #{tpu_custom_call.1} parent=5 // pred_check
        %p761 = pneg %p760
      $region58: #{tpu_custom_call.1} parent=5 // pred_check_branch
        %763 = sbr.rel (%p761) target = $region60
      $region59: #{tpu_custom_call.1} parent=5 // pred_region
        %s764 = ssub.s32 %s16, 2
        // Predicated region
        $region61: #{tpu_custom_call.1} parent=59 // pred_check
          %p765 = pneg %p148
        $region62: #{tpu_custom_call.1} parent=59 // pred_check_branch
          %767 = sbr.rel (%p765) target = $region64
        $region63: #{tpu_custom_call.1} parent=59 // pred_region
          %s768 = sand.u32 %s133, 1
          %s769 = scalar_lea.sflag [#allocation5], %s768
          %s770 = sand.u32 %s133, 1
          %s771 = smul.addr %s770, 64
          %s772 = scalar_lea.vmem [#allocation9], %s771
          %774 = dma.done %s769, 1024
        $region64: #{tpu_custom_call.1} parent=59 // pred_fallthru
          _
      $region60: #{tpu_custom_call.1} parent=5 // pred_fallthru
        _
    $region6: #{tpu_custom_call.1} parent=1 // loop_footer
      %s20 = sadd.s32 1, %s16
    $region7: #{tpu_custom_call.1} parent=1 // loop_footer_branch
      %15 = sbr.rel target = $region3
    $region8: #{tpu_custom_call.1} parent=1 // loop_exit
      _
    %775 = vsyncpa [#allocation4], 1
    %s776 = scalar_lea.sflag [#allocation4], 1
    %777 = vsyncpa %s776, 1
    %778 = vsyncpa [#allocation7], 1
    %s779 = scalar_lea.sflag [#allocation7], 1
    %780 = vsyncpa %s779, 1
    %781 = vsyncpa [#allocation5], 1
    %s782 = scalar_lea.sflag [#allocation5], 1
    %783 = vsyncpa %s782, 1

</llo_original>
